<compile_context>
chip_gen: v5e
topology: v5e:2x2
jax: 0.10.0
libtpu: 0.0.40
codegen_flags: <defaults>
</compile_context>

<pallas_src>
import functools

import jax
import jax.numpy as jnp
from jax.experimental import pallas as pl
from jax.experimental.pallas import tpu as pltpu


def _round_up(x, m):
    return (x + m - 1) // m * m


# ---------------------------------------------------------------------------
# Kernel: fused 6-layer MLP forward for one batch tile.
# ---------------------------------------------------------------------------
def _triae_kernel(x_ref, w0, w1, w2, w3, w4, w5, b0, b1, b2, b3, b4, b5,
                  out_ref, *, merged, z_width):
    """x_ref: (tile_b, n_input) activations (compute dtype, unpadded lanes).
    wK   : per-layer zero-padded, pre-transposed weights (compute dtype).
    bK   : per-layer zero-padded biases, shape (1, N_k), f32.
    out  : (tile_b, out_width) f32; merged z/x_bar slab (or lane-concat)."""
    compute_dtype = w0.dtype

    def layer(h, w_ref, b_ref, relu):
        y = jnp.dot(h.astype(compute_dtype), w_ref[...],
                    preferred_element_type=jnp.float32) + b_ref[...]
        return jnp.maximum(y, 0.0) if relu else y

    h = layer(x_ref[...], w0, b0, True)      # enc_1 + ReLU
    h = layer(h, w1, b1, True)               # enc_2 + ReLU
    z = layer(h, w2, b2, False)              # z_layer (no activation)
    h = layer(z, w3, b3, True)               # dec_1 + ReLU
    h = layer(h, w4, b4, True)               # dec_2 + ReLU
    x_bar = layer(h, w5, b5, False)          # x_bar_layer (no activation)

    if merged:
        # z lives in lanes [0, n_z), x_bar in lanes [n_z, n_z+n_input);
        # all other lanes of both tensors are exactly zero -> sum is exact.
        out_ref[...] = (z + x_bar).astype(out_ref.dtype)
    else:
        out_ref[:, :z_width] = z.astype(out_ref.dtype)
        out_ref[:, z_width:] = x_bar.astype(out_ref.dtype)


# ---------------------------------------------------------------------------
# One-time parameter packing (call once; NOT in the hot path).
# ---------------------------------------------------------------------------
def prepare_triae_params(params, *, compute_dtype=jnp.bfloat16):
    """Pads/packs the 6 Linear layers into lane-dense, per-layer operands.

    `params` holds transposed weights (in, out) and biases (1, out):
      w1,b1 (enc_1), w2,b2 (enc_2), wz,bz (z_layer),
      w3,b3 (dec_1), w4,b4 (dec_2), wx,bx (x_bar_layer).
    """
    n_input = params["w1"].shape[0]
    n_z = params["wz"].shape[1]

    merged = (n_z + n_input) <= 128  # z and x_bar share one 128-lane output
    ru = lambda n: _round_up(n, 128)

    N0 = ru(params["w1"].shape[1])           # enc_1 out
    N1 = ru(params["w2"].shape[1])           # enc_2 out
    N2 = 128 if merged else ru(n_z)          # z_layer out (widened when merged)
    N3 = ru(params["w3"].shape[1])           # dec_1 out
    N4 = ru(params["w4"].shape[1])           # dec_2 out
    N5 = 128 if merged else ru(n_input)      # x_bar out
    xbar_off = n_z if merged else 0          # x_bar column offset inside its slab

    # (weight, bias, padded K, padded N, column offset).  Layer 0 keeps the raw
    # K = n_input so x can be passed with NO host-side lane padding.
    plan = [
        ("w1", "b1", n_input, N0, 0),
        ("w2", "b2", N0, N1, 0),
        ("wz", "bz", N1, N2, 0),
        ("w3", "b3", N2, N3, 0),
        ("w4", "b4", N3, N4, 0),
        ("wx", "bx", N4, N5, xbar_off),
    ]

    weights, biases = [], []
    for wn, bn, K, N, off in plan:
        w, b = params[wn], params[bn]
        kw, nw = w.shape
        weights.append(jnp.pad(w.astype(compute_dtype),
                               ((0, K - kw), (off, N - off - nw))))
        biases.append(jnp.pad(b.astype(jnp.float32),
                              ((0, 0), (off, N - off - nw))))

    return dict(
        weights=tuple(weights),
        biases=tuple(biases),
        n_input=n_input,
        n_z=n_z,
        merged=merged,
        z_width=N2,
        out_width=(128 if merged else N2 + N5),
    )


# ---------------------------------------------------------------------------
# Forward pass (hot path): one pallas_call over batch tiles.
# ---------------------------------------------------------------------------
def triae_forward(x, packed, *, tile_b=None):
    B, n_input = x.shape
    assert n_input == packed["n_input"]
    weights, biases = packed["weights"], packed["biases"]
    compute_dtype = weights[0].dtype
    n_z, merged = packed["n_z"], packed["merged"]
    z_width, out_width = packed["z_width"], packed["out_width"]

    # Batch tiling: whole (8-aligned) batch for small B; cap at 512 rows; for
    # large B ensure >= 2 tiles so both v7x TensorCores get a "parallel" tile.
    if tile_b is None:
        tile_b = min(_round_up(B, 8), 512)
        if B >= 256:
            tile_b = min(tile_b, _round_up((B + 1) // 2, 8))
    tile_b = _round_up(tile_b, 8)
    B_pad = _round_up(max(B, tile_b), tile_b)
    n_tiles = B_pad // tile_b

    x = x.astype(compute_dtype)
    if B_pad != B:
        # Only pad batch rows when needed (cheap); feature lanes stay unpadded.
        x = jnp.pad(x, ((0, B_pad - B), (0, 0)))

    # VMEM budget: resident weights/biases (constant index maps -> fetched once)
    # plus double-buffered x/out tiles, with 2x headroom; clamped to 64 MiB so
    # the same limit is valid on v7x (64 MiB physical VMEM per TensorCore).
    w_bytes = sum(int(w.size) * w.dtype.itemsize for w in weights)
    b_bytes = sum(int(b.size) * b.dtype.itemsize for b in biases)
    io_bytes = (2 * tile_b * n_input * jnp.dtype(compute_dtype).itemsize
                + 2 * tile_b * out_width * 4)
    vmem_limit = int(min(64 * 1024 * 1024,
                         max(32 * 1024 * 1024,
                             2 * (w_bytes + b_bytes + io_bytes))))

    cost = pl.CostEstimate(
        flops=2 * B_pad * sum(w.shape[0] * w.shape[1] for w in weights),
        transcendentals=0,
        bytes_accessed=(B_pad * n_input * jnp.dtype(compute_dtype).itemsize
                        + w_bytes + b_bytes + B_pad * out_width * 4),
    )

    def const_spec(shape):
        # Constant block index across all grid steps -> single DMA, resident.
        return pl.BlockSpec(shape, lambda i: (0, 0))

    out = pl.pallas_call(
        functools.partial(_triae_kernel, merged=merged, z_width=z_width),
        out_shape=jax.ShapeDtypeStruct((B_pad, out_width), jnp.float32),
        grid_spec=pltpu.PrefetchScalarGridSpec(
            num_scalar_prefetch=0,
            grid=(n_tiles,),
            in_specs=[pl.BlockSpec((tile_b, n_input), lambda i: (i, 0))]
                     + [const_spec(w.shape) for w in weights]
                     + [const_spec(b.shape) for b in biases],
            out_specs=pl.BlockSpec((tile_b, out_width), lambda i: (i, 0)),
        ),
        compiler_params=pltpu.CompilerParams(
            dimension_semantics=("parallel",),
            vmem_limit_bytes=vmem_limit),
        cost_estimate=cost,
    )(x, *weights, *biases)

    z = out[:B, :n_z]
    if merged:
        x_bar = out[:B, n_z:n_z + n_input]
    else:
        x_bar = out[:B, z_width:z_width + n_input]
    return z, x_bar


# ---------------------------------------------------------------------------
# Reference / init helpers
# ---------------------------------------------------------------------------
def init_linear(key, n_in, n_out):
    """Matches torch.nn.Linear default init (uniform +-1/sqrt(fan_in)).
    Weight returned already transposed to (n_in, n_out); bias as (1, n_out)."""
    kw, kb = jax.random.split(key)
    bound = 1.0 / jnp.sqrt(float(n_in))
    w = jax.random.uniform(kw, (n_in, n_out), jnp.float32, -bound, bound)
    b = jax.random.uniform(kb, (1, n_out), jnp.float32, -bound, bound)
    return w, b


def reference_forward(x, p):
    relu = lambda t: jnp.maximum(t, 0.0)
    h1 = relu(x @ p["w1"] + p["b1"])
    h2 = relu(h1 @ p["w2"] + p["b2"])
    z = h2 @ p["wz"] + p["bz"]
    d1 = relu(z @ p["w3"] + p["b3"])
    d2 = relu(d1 @ p["w4"] + p["b4"])
    x_bar = d2 @ p["wx"] + p["bx"]
    return z, x_bar


if __name__ == "__main__":
    # Small sizes consistent with the module.
    n_input, n_enc_1, n_enc_2, n_z = 16, 32, 64, 8
    n_dec_1, n_dec_2 = 64, 32
    B = 16

    key = jax.random.PRNGKey(0)
    keys = jax.random.split(key, 7)

    params = {}
    params["w1"], params["b1"] = init_linear(keys[0], n_input, n_enc_1)
    params["w2"], params["b2"] = init_linear(keys[1], n_enc_1, n_enc_2)
    params["wz"], params["bz"] = init_linear(keys[2], n_enc_2, n_z)
    params["w3"], params["b3"] = init_linear(keys[3], n_z, n_dec_1)
    params["w4"], params["b4"] = init_linear(keys[4], n_dec_1, n_dec_2)
    params["wx"], params["bx"] = init_linear(keys[5], n_dec_2, n_input)

    x = jax.random.normal(keys[6], (B, n_input), jnp.float32)
    z_ref, x_bar_ref = reference_forward(x, params)

    # f32 path: exact match to the reference.
    packed_f32 = prepare_triae_params(params, compute_dtype=jnp.float32)
    z, x_bar = triae_forward(x, packed_f32)
    jax.block_until_ready((z, x_bar))
    assert z.shape == (B, n_z) and x_bar.shape == (B, n_input)
    assert jnp.allclose(z, z_ref, atol=1e-5, rtol=1e-5)
    assert jnp.allclose(x_bar, x_bar_ref, atol=1e-5, rtol=1e-5)

    # bf16 path (default; MXU-native on v6e/v7x). Error compounds over 6
    # cascaded bf16 matmuls, so tolerance vs. the f32 reference is loose.
    packed_bf16 = prepare_triae_params(params)  # compute_dtype=bf16
    z_bf, x_bar_bf = triae_forward(x, packed_bf16)
    jax.block_until_ready((z_bf, x_bar_bf))
    assert jnp.allclose(z_bf, z_ref, atol=1e-1, rtol=1e-1)
    assert jnp.allclose(x_bar_bf, x_bar_ref, atol=1e-1, rtol=1e-1)

    print("KERNEL_OK")
</pallas_src>

<mosaic_0001>
module attributes {stable_mosaic.version = 11 : i64} {
  func.func @_triae_kernel(%arg0: i32, %arg1: memref<16x16xf32, #tpu.memory_space<vmem>>, %arg2: memref<16x128xf32, #tpu.memory_space<vmem>>, %arg3: memref<128x128xf32, #tpu.memory_space<vmem>>, %arg4: memref<128x128xf32, #tpu.memory_space<vmem>>, %arg5: memref<128x128xf32, #tpu.memory_space<vmem>>, %arg6: memref<128x128xf32, #tpu.memory_space<vmem>>, %arg7: memref<128x128xf32, #tpu.memory_space<vmem>>, %arg8: memref<1x128xf32, #tpu.memory_space<vmem>>, %arg9: memref<1x128xf32, #tpu.memory_space<vmem>>, %arg10: memref<1x128xf32, #tpu.memory_space<vmem>>, %arg11: memref<1x128xf32, #tpu.memory_space<vmem>>, %arg12: memref<1x128xf32, #tpu.memory_space<vmem>>, %arg13: memref<1x128xf32, #tpu.memory_space<vmem>>, %arg14: memref<16x128xf32, #tpu.memory_space<vmem>>) attributes {dimension_semantics = [#tpu.dimension_semantics<parallel>], iteration_bounds = array<i64: 1>, scalar_prefetch = 0 : i64, scratch_operands = 0 : i64, tpu.core_type = #tpu.core_type<tc>, window_params = [{transform_indices = @transform_0, window_bounds = array<i64: 16, 16>}, {pipeline_mode = #tpu.pipeline_mode<synchronous>, transform_indices = @transform_1, window_bounds = array<i64: 16, 128>}, {pipeline_mode = #tpu.pipeline_mode<synchronous>, transform_indices = @transform_2, window_bounds = array<i64: 128, 128>}, {pipeline_mode = #tpu.pipeline_mode<synchronous>, transform_indices = @transform_3, window_bounds = array<i64: 128, 128>}, {pipeline_mode = #tpu.pipeline_mode<synchronous>, transform_indices = @transform_4, window_bounds = array<i64: 128, 128>}, {pipeline_mode = #tpu.pipeline_mode<synchronous>, transform_indices = @transform_5, window_bounds = array<i64: 128, 128>}, {pipeline_mode = #tpu.pipeline_mode<synchronous>, transform_indices = @transform_6, window_bounds = array<i64: 128, 128>}, {pipeline_mode = #tpu.pipeline_mode<synchronous>, transform_indices = @transform_7, window_bounds = array<i64: 1, 128>}, {pipeline_mode = #tpu.pipeline_mode<synchronous>, transform_indices = @transform_8, window_bounds = array<i64: 1, 128>}, {pipeline_mode = #tpu.pipeline_mode<synchronous>, transform_indices = @transform_9, window_bounds = array<i64: 1, 128>}, {pipeline_mode = #tpu.pipeline_mode<synchronous>, transform_indices = @transform_10, window_bounds = array<i64: 1, 128>}, {pipeline_mode = #tpu.pipeline_mode<synchronous>, transform_indices = @transform_11, window_bounds = array<i64: 1, 128>}, {pipeline_mode = #tpu.pipeline_mode<synchronous>, transform_indices = @transform_12, window_bounds = array<i64: 1, 128>}, {transform_indices = @transform_13, window_bounds = array<i64: 16, 128>}]} {
    %c0 = arith.constant 0 : index
    %c0_0 = arith.constant 0 : index
    %0 = vector.load %arg1[%c0, %c0_0] : memref<16x16xf32, #tpu.memory_space<vmem>>, vector<16x16xf32>
    %c0_1 = arith.constant 0 : index
    %c0_2 = arith.constant 0 : index
    %1 = vector.load %arg2[%c0_1, %c0_2] : memref<16x128xf32, #tpu.memory_space<vmem>>, vector<16x128xf32>
    %cst = arith.constant dense<0.000000e+00> : vector<16x128xf32>
    %2 = tpu.matmul %0, %1, %cst {dimension_numbers = #tpu.dot_dimension_numbers<[1], [0], [0], [1], [0, 0, 1, 1], [], []>} : vector<16x16xf32>, vector<16x128xf32>, vector<16x128xf32> -> vector<16x128xf32>
    %c0_3 = arith.constant 0 : index
    %c0_4 = arith.constant 0 : index
    %3 = vector.load %arg8[%c0_3, %c0_4] : memref<1x128xf32, #tpu.memory_space<vmem>>, vector<1x128xf32>
    %4 = vector.broadcast %3 : vector<1x128xf32> to vector<16x128xf32>
    %5 = arith.addf %2, %4 : vector<16x128xf32>
    %cst_5 = arith.constant 0.000000e+00 : f32
    %6 = vector.broadcast %cst_5 : f32 to vector<16x128xf32>
    %7 = arith.maximumf %5, %6 : vector<16x128xf32>
    %c0_6 = arith.constant 0 : index
    %c0_7 = arith.constant 0 : index
    %8 = vector.load %arg3[%c0_6, %c0_7] : memref<128x128xf32, #tpu.memory_space<vmem>>, vector<128x128xf32>
    %cst_8 = arith.constant dense<0.000000e+00> : vector<16x128xf32>
    %9 = tpu.matmul %7, %8, %cst_8 {dimension_numbers = #tpu.dot_dimension_numbers<[1], [0], [0], [1], [0, 0, 1, 1], [], []>} : vector<16x128xf32>, vector<128x128xf32>, vector<16x128xf32> -> vector<16x128xf32>
    %c0_9 = arith.constant 0 : index
    %c0_10 = arith.constant 0 : index
    %10 = vector.load %arg9[%c0_9, %c0_10] : memref<1x128xf32, #tpu.memory_space<vmem>>, vector<1x128xf32>
    %11 = vector.broadcast %10 : vector<1x128xf32> to vector<16x128xf32>
    %12 = arith.addf %9, %11 : vector<16x128xf32>
    %cst_11 = arith.constant 0.000000e+00 : f32
    %13 = vector.broadcast %cst_11 : f32 to vector<16x128xf32>
    %14 = arith.maximumf %12, %13 : vector<16x128xf32>
    %c0_12 = arith.constant 0 : index
    %c0_13 = arith.constant 0 : index
    %15 = vector.load %arg4[%c0_12, %c0_13] : memref<128x128xf32, #tpu.memory_space<vmem>>, vector<128x128xf32>
    %cst_14 = arith.constant dense<0.000000e+00> : vector<16x128xf32>
    %16 = tpu.matmul %14, %15, %cst_14 {dimension_numbers = #tpu.dot_dimension_numbers<[1], [0], [0], [1], [0, 0, 1, 1], [], []>} : vector<16x128xf32>, vector<128x128xf32>, vector<16x128xf32> -> vector<16x128xf32>
    %c0_15 = arith.constant 0 : index
    %c0_16 = arith.constant 0 : index
    %17 = vector.load %arg10[%c0_15, %c0_16] : memref<1x128xf32, #tpu.memory_space<vmem>>, vector<1x128xf32>
    %18 = vector.broadcast %17 : vector<1x128xf32> to vector<16x128xf32>
    %19 = arith.addf %16, %18 : vector<16x128xf32>
    %c0_17 = arith.constant 0 : index
    %c0_18 = arith.constant 0 : index
    %20 = vector.load %arg5[%c0_17, %c0_18] : memref<128x128xf32, #tpu.memory_space<vmem>>, vector<128x128xf32>
    %cst_19 = arith.constant dense<0.000000e+00> : vector<16x128xf32>
    %21 = tpu.matmul %19, %20, %cst_19 {dimension_numbers = #tpu.dot_dimension_numbers<[1], [0], [0], [1], [0, 0, 1, 1], [], []>} : vector<16x128xf32>, vector<128x128xf32>, vector<16x128xf32> -> vector<16x128xf32>
    %c0_20 = arith.constant 0 : index
    %c0_21 = arith.constant 0 : index
    %22 = vector.load %arg11[%c0_20, %c0_21] : memref<1x128xf32, #tpu.memory_space<vmem>>, vector<1x128xf32>
    %23 = vector.broadcast %22 : vector<1x128xf32> to vector<16x128xf32>
    %24 = arith.addf %21, %23 : vector<16x128xf32>
    %cst_22 = arith.constant 0.000000e+00 : f32
    %25 = vector.broadcast %cst_22 : f32 to vector<16x128xf32>
    %26 = arith.maximumf %24, %25 : vector<16x128xf32>
    %c0_23 = arith.constant 0 : index
    %c0_24 = arith.constant 0 : index
    %27 = vector.load %arg6[%c0_23, %c0_24] : memref<128x128xf32, #tpu.memory_space<vmem>>, vector<128x128xf32>
    %cst_25 = arith.constant dense<0.000000e+00> : vector<16x128xf32>
    %28 = tpu.matmul %26, %27, %cst_25 {dimension_numbers = #tpu.dot_dimension_numbers<[1], [0], [0], [1], [0, 0, 1, 1], [], []>} : vector<16x128xf32>, vector<128x128xf32>, vector<16x128xf32> -> vector<16x128xf32>
    %c0_26 = arith.constant 0 : index
    %c0_27 = arith.constant 0 : index
    %29 = vector.load %arg12[%c0_26, %c0_27] : memref<1x128xf32, #tpu.memory_space<vmem>>, vector<1x128xf32>
    %30 = vector.broadcast %29 : vector<1x128xf32> to vector<16x128xf32>
    %31 = arith.addf %28, %30 : vector<16x128xf32>
    %cst_28 = arith.constant 0.000000e+00 : f32
    %32 = vector.broadcast %cst_28 : f32 to vector<16x128xf32>
    %33 = arith.maximumf %31, %32 : vector<16x128xf32>
    %c0_29 = arith.constant 0 : index
    %c0_30 = arith.constant 0 : index
    %34 = vector.load %arg7[%c0_29, %c0_30] : memref<128x128xf32, #tpu.memory_space<vmem>>, vector<128x128xf32>
    %cst_31 = arith.constant dense<0.000000e+00> : vector<16x128xf32>
    %35 = tpu.matmul %33, %34, %cst_31 {dimension_numbers = #tpu.dot_dimension_numbers<[1], [0], [0], [1], [0, 0, 1, 1], [], []>} : vector<16x128xf32>, vector<128x128xf32>, vector<16x128xf32> -> vector<16x128xf32>
    %c0_32 = arith.constant 0 : index
    %c0_33 = arith.constant 0 : index
    %36 = vector.load %arg13[%c0_32, %c0_33] : memref<1x128xf32, #tpu.memory_space<vmem>>, vector<1x128xf32>
    %37 = vector.broadcast %36 : vector<1x128xf32> to vector<16x128xf32>
    %38 = arith.addf %35, %37 : vector<16x128xf32>
    %39 = arith.addf %19, %38 : vector<16x128xf32>
    %c0_34 = arith.constant 0 : index
    %c0_35 = arith.constant 0 : index
    %40 = vector.load %arg14[%c0_34, %c0_35] : memref<16x128xf32, #tpu.memory_space<vmem>>, vector<16x128xf32>
    tpu.vector_store %arg14[%c0_34, %c0_35], %39 {strides = array<i32>} : memref<16x128xf32, #tpu.memory_space<vmem>>, vector<16x128xf32>,
    return
  }
  func.func @transform_0(%arg0: i32) -> (i32, i32) {
    %c0_i32 = arith.constant 0 : i32
    %c0_i32_0 = arith.constant 0 : i32
    return %arg0, %c0_i32 : i32, i32
  }
  func.func @transform_1(%arg0: i32) -> (i32, i32) {
    %c0_i32 = arith.constant 0 : i32
    %c0_i32_0 = arith.constant 0 : i32
    %c0_i32_1 = arith.constant 0 : i32
    return %c0_i32, %c0_i32_0 : i32, i32
  }
  func.func @transform_2(%arg0: i32) -> (i32, i32) {
    %c0_i32 = arith.constant 0 : i32
    %c0_i32_0 = arith.constant 0 : i32
    %c0_i32_1 = arith.constant 0 : i32
    return %c0_i32, %c0_i32_0 : i32, i32
  }
  func.func @transform_3(%arg0: i32) -> (i32, i32) {
    %c0_i32 = arith.constant 0 : i32
    %c0_i32_0 = arith.constant 0 : i32
    %c0_i32_1 = arith.constant 0 : i32
    return %c0_i32, %c0_i32_0 : i32, i32
  }
  func.func @transform_4(%arg0: i32) -> (i32, i32) {
    %c0_i32 = arith.constant 0 : i32
    %c0_i32_0 = arith.constant 0 : i32
    %c0_i32_1 = arith.constant 0 : i32
    return %c0_i32, %c0_i32_0 : i32, i32
  }
  func.func @transform_5(%arg0: i32) -> (i32, i32) {
    %c0_i32 = arith.constant 0 : i32
    %c0_i32_0 = arith.constant 0 : i32
    %c0_i32_1 = arith.constant 0 : i32
    return %c0_i32, %c0_i32_0 : i32, i32
  }
  func.func @transform_6(%arg0: i32) -> (i32, i32) {
    %c0_i32 = arith.constant 0 : i32
    %c0_i32_0 = arith.constant 0 : i32
    %c0_i32_1 = arith.constant 0 : i32
    return %c0_i32, %c0_i32_0 : i32, i32
  }
  func.func @transform_7(%arg0: i32) -> (i32, i32) {
    %c0_i32 = arith.constant 0 : i32
    %c0_i32_0 = arith.constant 0 : i32
    %c0_i32_1 = arith.constant 0 : i32
    return %c0_i32, %c0_i32_0 : i32, i32
  }
  func.func @transform_8(%arg0: i32) -> (i32, i32) {
    %c0_i32 = arith.constant 0 : i32
    %c0_i32_0 = arith.constant 0 : i32
    %c0_i32_1 = arith.constant 0 : i32
    return %c0_i32, %c0_i32_0 : i32, i32
  }
  func.func @transform_9(%arg0: i32) -> (i32, i32) {
    %c0_i32 = arith.constant 0 : i32
    %c0_i32_0 = arith.constant 0 : i32
    %c0_i32_1 = arith.constant 0 : i32
    return %c0_i32, %c0_i32_0 : i32, i32
  }
  func.func @transform_10(%arg0: i32) -> (i32, i32) {
    %c0_i32 = arith.constant 0 : i32
    %c0_i32_0 = arith.constant 0 : i32
    %c0_i32_1 = arith.constant 0 : i32
    return %c0_i32, %c0_i32_0 : i32, i32
  }
  func.func @transform_11(%arg0: i32) -> (i32, i32) {
    %c0_i32 = arith.constant 0 : i32
    %c0_i32_0 = arith.constant 0 : i32
    %c0_i32_1 = arith.constant 0 : i32
    return %c0_i32, %c0_i32_0 : i32, i32
  }
  func.func @transform_12(%arg0: i32) -> (i32, i32) {
    %c0_i32 = arith.constant 0 : i32
    %c0_i32_0 = arith.constant 0 : i32
    %c0_i32_1 = arith.constant 0 : i32
    return %c0_i32, %c0_i32_0 : i32, i32
  }
  func.func @transform_13(%arg0: i32) -> (i32, i32) {
    %c0_i32 = arith.constant 0 : i32
    %c0_i32_0 = arith.constant 0 : i32
    return %arg0, %c0_i32 : i32, i32
  }
}

</mosaic_0001>

<llo_original>
// kernel: tpu_custom_call.1
$region0: #{tpu_custom_call.1}
  #allocation0 [shape = 'u32[]', space=smem, size = 0x4, offset = 0x4, fixed_abs, tag = 'smem constant byte address 0x4 - core index']
  #allocation1 [shape = 'u32[72,128]{1,0:T(1,128)}', space=vmem, size = 0x9000, scoped, tag = 'internal scratch']
  %s0 = inlined_call_operand.hbm [shape: f32[16,16], index: 0, kind: input, shape index: {}]
  %s1 = inlined_call_operand.hbm [shape: f32[16,128], index: 1, kind: input, shape index: {}]
  %s2 = inlined_call_operand.hbm [shape: f32[128,128], index: 2, kind: input, shape index: {}]
  %s3 = inlined_call_operand.hbm [shape: f32[128,128], index: 3, kind: input, shape index: {}]
  %s4 = inlined_call_operand.hbm [shape: f32[128,128], index: 4, kind: input, shape index: {}]
  %s5 = inlined_call_operand.hbm [shape: f32[128,128], index: 5, kind: input, shape index: {}]
  %s6 = inlined_call_operand.hbm [shape: f32[128,128], index: 6, kind: input, shape index: {}]
  %s7 = inlined_call_operand.vmem [shape: f32[1,128], index: 7, kind: input, shape index: {}]
  %s8 = inlined_call_operand.vmem [shape: f32[1,128], index: 8, kind: input, shape index: {}]
  %s9 = inlined_call_operand.vmem [shape: f32[1,128], index: 9, kind: input, shape index: {}]
  %s10 = inlined_call_operand.vmem [shape: f32[1,128], index: 10, kind: input, shape index: {}]
  %s11 = inlined_call_operand.vmem [shape: f32[1,128], index: 11, kind: input, shape index: {}]
  %s12 = inlined_call_operand.vmem [shape: f32[1,128], index: 12, kind: input, shape index: {}]
  %s13 = inlined_call_operand.hbm [shape: f32[16,128], index: 13, kind: output, shape index: {}]
  %s14 = sld [smem:[#allocation0]]
  $region90: #{tpu_custom_call.1} parent=0
    _
  %s16 = ssub.s32 1, %s14
  %s17 = scalar_select 0, %s16, %s14
  $region1: #{tpu_custom_call.1} parent=0
    #allocation2 [shape = 'u8[8192]{0}', space=vmem, size = 0x2000, scoped, tag = 'input window, operand 0, single buffered']
    #allocation3 [shape = 's32[1]{0}', space=sflag, size = 0x4, scoped, tag = 'scoped memory for tpu_custom_call.1']
    #allocation4 [shape = 's32[1]{0}', space=sflag, size = 0x4, scoped, tag = 'scoped memory for tpu_custom_call.1']
    #allocation5 [shape = 'u8[8192]{0}', space=vmem, size = 0x2000, scoped, tag = 'input window, operand 1, single buffered']
    #allocation6 [shape = 's32[1]{0}', space=sflag, size = 0x4, scoped, tag = 'scoped memory for tpu_custom_call.1']
    #allocation7 [shape = 'u8[65536]{0}', space=vmem, size = 0x10000, scoped, tag = 'input window, operand 2, single buffered']
    #allocation8 [shape = 'u8[65536]{0}', space=vmem, size = 0x10000, scoped, tag = 'input window, operand 3, single buffered']
    #allocation9 [shape = 's32[1]{0}', space=sflag, size = 0x4, scoped, tag = 'scoped memory for tpu_custom_call.1']
    #allocation10 [shape = 'u8[65536]{0}', space=vmem, size = 0x10000, scoped, tag = 'input window, operand 4, single buffered']
    #allocation11 [shape = 'u8[65536]{0}', space=vmem, size = 0x10000, scoped, tag = 'input window, operand 5, single buffered']
    #allocation12 [shape = 's32[1]{0}', space=sflag, size = 0x4, scoped, tag = 'scoped memory for tpu_custom_call.1']
    #allocation13 [shape = 'u8[65536]{0}', space=vmem, size = 0x10000, scoped, tag = 'input window, operand 6, single buffered']
    #allocation14 [shape = 'u8[8192]{0}', space=vmem, size = 0x2000, scoped, tag = 'output window, operand 0, single buffered']
    %18 = vsyncpa [#allocation3], 0
    %19 = vsyncpa [#allocation6], 0
    %20 = vsyncpa [#allocation9], 0
    %21 = vsyncpa [#allocation12], 0
    %22 = vsyncpa [#allocation4], 0
    // Predicated region
    $region2: #{tpu_custom_call.1} parent=1 // pred_check
      _
    $region3: #{tpu_custom_call.1} parent=1 // pred_check_branch
      %24 = sbr.rel (0) target = $region5
    $region4: #{tpu_custom_call.1} parent=1 // pred_region
      %26 = vsyncadd [#allocation3], 0
      %s27 = sshll.u32 %s0, 4
      %s28 = int_to_ptr.hbm [resolvable:$true] %s27
      %s29 = sshll.u32 [#allocation2], 4
      %s30 = int_to_ptr.vmem [resolvable:$true] %s29
      %35 = dma.hbm_to_vmem [thread:$0]  %s28, 256, %s30, [#allocation3], 128, 128, 8
    $region5: #{tpu_custom_call.1} parent=1 // pred_fallthru
      _
    // Predicated region
    $region6: #{tpu_custom_call.1} parent=1 // pred_check
      _
    $region7: #{tpu_custom_call.1} parent=1 // pred_check_branch
      %37 = sbr.rel (0) target = $region9
    $region8: #{tpu_custom_call.1} parent=1 // pred_region
      %39 = vsyncadd [#allocation6], 0
      %s40 = sshll.u32 %s1, 4
      %s41 = int_to_ptr.hbm [resolvable:$true] %s40
      %s42 = sshll.u32 [#allocation5], 4
      %s43 = int_to_ptr.vmem [resolvable:$true] %s42
      %48 = dma.hbm_to_vmem [thread:$0]  %s41, 256, %s43, [#allocation6], 128, 128, 8
    $region9: #{tpu_custom_call.1} parent=1 // pred_fallthru
      _
    // Predicated region
    $region10: #{tpu_custom_call.1} parent=1 // pred_check
      _
    $region11: #{tpu_custom_call.1} parent=1 // pred_check_branch
      %50 = sbr.rel (0) target = $region13
    $region12: #{tpu_custom_call.1} parent=1 // pred_region
      %52 = vsyncadd [#allocation6], 0
      %s53 = sshll.u32 %s2, 4
      %s54 = int_to_ptr.hbm [resolvable:$true] %s53
      %s55 = sshll.u32 [#allocation7], 4
      %s56 = int_to_ptr.vmem [resolvable:$true] %s55
      %61 = dma.hbm_to_vmem [thread:$0]  %s54, 2048, %s56, [#allocation6], 128, 128, 8
    $region13: #{tpu_custom_call.1} parent=1 // pred_fallthru
      _
    // Predicated region
    $region14: #{tpu_custom_call.1} parent=1 // pred_check
      _
    $region15: #{tpu_custom_call.1} parent=1 // pred_check_branch
      %63 = sbr.rel (0) target = $region17
    $region16: #{tpu_custom_call.1} parent=1 // pred_region
      %65 = vsyncadd [#allocation9], 0
      %s66 = sshll.u32 %s3, 4
      %s67 = int_to_ptr.hbm [resolvable:$true] %s66
      %s68 = sshll.u32 [#allocation8], 4
      %s69 = int_to_ptr.vmem [resolvable:$true] %s68
      %74 = dma.hbm_to_vmem [thread:$0]  %s67, 2048, %s69, [#allocation9], 128, 128, 8
    $region17: #{tpu_custom_call.1} parent=1 // pred_fallthru
      _
    // Predicated region
    $region18: #{tpu_custom_call.1} parent=1 // pred_check
      _
    $region19: #{tpu_custom_call.1} parent=1 // pred_check_branch
      %76 = sbr.rel (0) target = $region21
    $region20: #{tpu_custom_call.1} parent=1 // pred_region
      %78 = vsyncadd [#allocation9], 0
      %s79 = sshll.u32 %s4, 4
      %s80 = int_to_ptr.hbm [resolvable:$true] %s79
      %s81 = sshll.u32 [#allocation10], 4
      %s82 = int_to_ptr.vmem [resolvable:$true] %s81
      %87 = dma.hbm_to_vmem [thread:$0]  %s80, 2048, %s82, [#allocation9], 128, 128, 8
    $region21: #{tpu_custom_call.1} parent=1 // pred_fallthru
      _
    // Predicated region
    $region22: #{tpu_custom_call.1} parent=1 // pred_check
      _
    $region23: #{tpu_custom_call.1} parent=1 // pred_check_branch
      %89 = sbr.rel (0) target = $region25
    $region24: #{tpu_custom_call.1} parent=1 // pred_region
      %91 = vsyncadd [#allocation12], 0
      %s92 = sshll.u32 %s5, 4
      %s93 = int_to_ptr.hbm [resolvable:$true] %s92
      %s94 = sshll.u32 [#allocation11], 4
      %s95 = int_to_ptr.vmem [resolvable:$true] %s94
      %100 = dma.hbm_to_vmem [thread:$0]  %s93, 2048, %s95, [#allocation12], 128, 128, 8
    $region25: #{tpu_custom_call.1} parent=1 // pred_fallthru
      _
    // Predicated region
    $region26: #{tpu_custom_call.1} parent=1 // pred_check
      _
    $region27: #{tpu_custom_call.1} parent=1 // pred_check_branch
      %102 = sbr.rel (0) target = $region29
    $region28: #{tpu_custom_call.1} parent=1 // pred_region
      %104 = vsyncadd [#allocation12], 0
      %s105 = sshll.u32 %s6, 4
      %s106 = int_to_ptr.hbm [resolvable:$true] %s105
      %s107 = sshll.u32 [#allocation13], 4
      %s108 = int_to_ptr.vmem [resolvable:$true] %s107
      %113 = dma.hbm_to_vmem [thread:$0]  %s106, 2048, %s108, [#allocation12], 128, 128, 8
    $region29: #{tpu_custom_call.1} parent=1 // pred_fallthru
      _
    // Predicated region
    $region30: #{tpu_custom_call.1} parent=1 // pred_check
      _
    $region31: #{tpu_custom_call.1} parent=1 // pred_check_branch
      %115 = sbr.rel (0) target = $region33
    $region32: #{tpu_custom_call.1} parent=1 // pred_region
      _
    $region33: #{tpu_custom_call.1} parent=1 // pred_fallthru
      _
    // Predicated region
    $region34: #{tpu_custom_call.1} parent=1 // pred_check
      _
    $region35: #{tpu_custom_call.1} parent=1 // pred_check_branch
      %117 = sbr.rel (0) target = $region37
    $region36: #{tpu_custom_call.1} parent=1 // pred_region
      _
    $region37: #{tpu_custom_call.1} parent=1 // pred_fallthru
      _
    // Predicated region
    $region38: #{tpu_custom_call.1} parent=1 // pred_check
      _
    $region39: #{tpu_custom_call.1} parent=1 // pred_check_branch
      %119 = sbr.rel (0) target = $region41
    $region40: #{tpu_custom_call.1} parent=1 // pred_region
      _
    $region41: #{tpu_custom_call.1} parent=1 // pred_fallthru
      _
    // Predicated region
    $region42: #{tpu_custom_call.1} parent=1 // pred_check
      _
    $region43: #{tpu_custom_call.1} parent=1 // pred_check_branch
      %121 = sbr.rel (0) target = $region45
    $region44: #{tpu_custom_call.1} parent=1 // pred_region
      _
    $region45: #{tpu_custom_call.1} parent=1 // pred_fallthru
      _
    // Predicated region
    $region46: #{tpu_custom_call.1} parent=1 // pred_check
      _
    $region47: #{tpu_custom_call.1} parent=1 // pred_check_branch
      %123 = sbr.rel (0) target = $region49
    $region48: #{tpu_custom_call.1} parent=1 // pred_region
      _
    $region49: #{tpu_custom_call.1} parent=1 // pred_fallthru
      _
    // Predicated region
    $region50: #{tpu_custom_call.1} parent=1 // pred_check
      _
    $region51: #{tpu_custom_call.1} parent=1 // pred_check_branch
      %125 = sbr.rel (0) target = $region53
    $region52: #{tpu_custom_call.1} parent=1 // pred_region
      _
    $region53: #{tpu_custom_call.1} parent=1 // pred_fallthru
      _
    // Predicated region
    $region54: #{tpu_custom_call.1} parent=1 // pred_check
      _
    $region55: #{tpu_custom_call.1} parent=1 // pred_check_branch
      %127 = sbr.rel (0) target = $region57
    $region56: #{tpu_custom_call.1} parent=1 // pred_region
      %129 = dma.done [#allocation3], 256
    $region57: #{tpu_custom_call.1} parent=1 // pred_fallthru
      _
    // Predicated region
    $region58: #{tpu_custom_call.1} parent=1 // pred_check
      _
    $region59: #{tpu_custom_call.1} parent=1 // pred_check_branch
      %131 = sbr.rel (0) target = $region61
    $region60: #{tpu_custom_call.1} parent=1 // pred_region
      %133 = dma.done [#allocation6], 256
    $region61: #{tpu_custom_call.1} parent=1 // pred_fallthru
      _
    // Predicated region
    $region62: #{tpu_custom_call.1} parent=1 // pred_check
      _
    $region63: #{tpu_custom_call.1} parent=1 // pred_check_branch
      %135 = sbr.rel (0) target = $region65
    $region64: #{tpu_custom_call.1} parent=1 // pred_region
      %137 = dma.done [#allocation6], 2048
    $region65: #{tpu_custom_call.1} parent=1 // pred_fallthru
      _
    // Predicated region
    $region66: #{tpu_custom_call.1} parent=1 // pred_check
      _
    $region67: #{tpu_custom_call.1} parent=1 // pred_check_branch
      %139 = sbr.rel (0) target = $region69
    $region68: #{tpu_custom_call.1} parent=1 // pred_region
      %141 = dma.done [#allocation9], 2048
    $region69: #{tpu_custom_call.1} parent=1 // pred_fallthru
      _
    // Predicated region
    $region70: #{tpu_custom_call.1} parent=1 // pred_check
      _
    $region71: #{tpu_custom_call.1} parent=1 // pred_check_branch
      %143 = sbr.rel (0) target = $region73
    $region72: #{tpu_custom_call.1} parent=1 // pred_region
      %145 = dma.done [#allocation9], 2048
    $region73: #{tpu_custom_call.1} parent=1 // pred_fallthru
      _
    // Predicated region
    $region74: #{tpu_custom_call.1} parent=1 // pred_check
      _
    $region75: #{tpu_custom_call.1} parent=1 // pred_check_branch
      %147 = sbr.rel (0) target = $region77
    $region76: #{tpu_custom_call.1} parent=1 // pred_region
      %149 = dma.done [#allocation12], 2048
    $region77: #{tpu_custom_call.1} parent=1 // pred_fallthru
      _
    // Predicated region
    $region78: #{tpu_custom_call.1} parent=1 // pred_check
      _
    $region79: #{tpu_custom_call.1} parent=1 // pred_check_branch
      %151 = sbr.rel (0) target = $region81
    $region80: #{tpu_custom_call.1} parent=1 // pred_region
      %153 = dma.done [#allocation12], 2048
    $region81: #{tpu_custom_call.1} parent=1 // pred_fallthru
      _
    %v154 = vld [vmem:[#allocation2] sm:$0xff]
    %v155 = vld [vmem:[#allocation2 + $0x8] sm:$0xff]
    %v156 = vld [vmem:[#allocation5] sm:$0xff]
    %v157 = vld [vmem:[#allocation5 + $0x8] sm:$0xff]
    %v158 = vld [vmem:[%s7] sm:$0x1]
    %v160 = vperm.slane %v158, 0
    %vm162 = vcmask 130048
    %v164 = vsel %vm162, %v154, 0
    %v167 = vsel %vm162, %v155, 0
    %169 = vmatpush.msra.mxu0 0.0
    %170 = vmatpush.msra.mxu0 0.0
    %171 = vmatpush.msra.mxu0 0.0
    %172 = vmatpush.msra.mxu0 0.0
    %173 = vmatpush.msra.mxu0 0.0
    %174 = vmatpush.msra.mxu0 0.0
    %175 = vmatpush.msra.mxu0 0.0
    %176 = vmatpush.msra.mxu0 0.0
    %177 = vmatpush.msra.mxu0 0.0
    %178 = vmatpush.msra.mxu0 0.0
    %179 = vmatpush.msra.mxu0 0.0
    %180 = vmatpush.msra.mxu0 0.0
    %181 = vmatpush.msra.mxu0 0.0
    %182 = vmatpush.msra.mxu0 0.0
    %183 = vmatpush.msra.mxu0 %v157
    %184 = vmatpush.msra.mxu0 %v156
    %185 = vmatmul.f32.gmra.mxu0 %v164
    %v186 = vpop.f32.mrf.mxu0
    %v187 = vadd.f32 %v160, %v186
    %188 = vmatmul.f32.gmra.mxu0 %v167
    %v189 = vpop.f32.mrf.mxu0
    %v190 = vadd.f32 %v160, %v189
    %191 = vdwg.mxu0
    %v192 = vmax.f32 %v187, 0.0
    %v193 = vmax.f32 %v190, 0.0
    %v194 = vld [vmem:[#allocation7] sm:$0xff]
    %v195 = vld [vmem:[#allocation7 + $0x8] sm:$0xff]
    %v196 = vld [vmem:[#allocation7 + $0x10] sm:$0xff]
    %v197 = vld [vmem:[#allocation7 + $0x18] sm:$0xff]
    %v198 = vld [vmem:[#allocation7 + $0x20] sm:$0xff]
    %v199 = vld [vmem:[#allocation7 + $0x28] sm:$0xff]
    %v200 = vld [vmem:[#allocation7 + $0x30] sm:$0xff]
    %v201 = vld [vmem:[#allocation7 + $0x38] sm:$0xff]
    %v202 = vld [vmem:[#allocation7 + $0x40] sm:$0xff]
    %v203 = vld [vmem:[#allocation7 + $0x48] sm:$0xff]
    %v204 = vld [vmem:[#allocation7 + $0x50] sm:$0xff]
    %v205 = vld [vmem:[#allocation7 + $0x58] sm:$0xff]
    %v206 = vld [vmem:[#allocation7 + $0x60] sm:$0xff]
    %v207 = vld [vmem:[#allocation7 + $0x68] sm:$0xff]
    %v208 = vld [vmem:[#allocation7 + $0x70] sm:$0xff]
    %v209 = vld [vmem:[#allocation7 + $0x78] sm:$0xff]
    %v210 = vld [vmem:[%s8] sm:$0x1]
    %v212 = vperm.slane %v210, 0
    %214 = vmatpush.msra.mxu0 %v209
    %215 = vmatpush.msra.mxu0 %v208
    %216 = vmatpush.msra.mxu0 %v207
    %217 = vmatpush.msra.mxu0 %v206
    %218 = vmatpush.msra.mxu0 %v205
    %219 = vmatpush.msra.mxu0 %v204
    %220 = vmatpush.msra.mxu0 %v203
    %221 = vmatpush.msra.mxu0 %v202
    %222 = vmatpush.msra.mxu0 %v201
    %223 = vmatpush.msra.mxu0 %v200
    %224 = vmatpush.msra.mxu0 %v199
    %225 = vmatpush.msra.mxu0 %v198
    %226 = vmatpush.msra.mxu0 %v197
    %227 = vmatpush.msra.mxu0 %v196
    %228 = vmatpush.msra.mxu0 %v195
    %229 = vmatpush.msra.mxu0 %v194
    %230 = vmatmul.f32.gmra.mxu0 %v192
    %v231 = vpop.f32.mrf.mxu0
    %v232 = vadd.f32 %v212, %v231
    %233 = vmatmul.f32.gmra.mxu0 %v193
    %v234 = vpop.f32.mrf.mxu0
    %v235 = vadd.f32 %v212, %v234
    %236 = vdwg.mxu0
    %v237 = vmax.f32 %v232, 0.0
    %v238 = vmax.f32 %v235, 0.0
    %v239 = vld [vmem:[#allocation8] sm:$0xff]
    %v240 = vld [vmem:[#allocation8 + $0x8] sm:$0xff]
    %v241 = vld [vmem:[#allocation8 + $0x10] sm:$0xff]
    %v242 = vld [vmem:[#allocation8 + $0x18] sm:$0xff]
    %v243 = vld [vmem:[#allocation8 + $0x20] sm:$0xff]
    %v244 = vld [vmem:[#allocation8 + $0x28] sm:$0xff]
    %v245 = vld [vmem:[#allocation8 + $0x30] sm:$0xff]
    %v246 = vld [vmem:[#allocation8 + $0x38] sm:$0xff]
    %v247 = vld [vmem:[#allocation8 + $0x40] sm:$0xff]
    %v248 = vld [vmem:[#allocation8 + $0x48] sm:$0xff]
    %v249 = vld [vmem:[#allocation8 + $0x50] sm:$0xff]
    %v250 = vld [vmem:[#allocation8 + $0x58] sm:$0xff]
    %v251 = vld [vmem:[#allocation8 + $0x60] sm:$0xff]
    %v252 = vld [vmem:[#allocation8 + $0x68] sm:$0xff]
    %v253 = vld [vmem:[#allocation8 + $0x70] sm:$0xff]
    %v254 = vld [vmem:[#allocation8 + $0x78] sm:$0xff]
    %v255 = vld [vmem:[%s9] sm:$0x1]
    %v257 = vperm.slane %v255, 0
    %259 = vmatpush.msra.mxu0 %v254
    %260 = vmatpush.msra.mxu0 %v253
    %261 = vmatpush.msra.mxu0 %v252
    %262 = vmatpush.msra.mxu0 %v251
    %263 = vmatpush.msra.mxu0 %v250
    %264 = vmatpush.msra.mxu0 %v249
    %265 = vmatpush.msra.mxu0 %v248
    %266 = vmatpush.msra.mxu0 %v247
    %267 = vmatpush.msra.mxu0 %v246
    %268 = vmatpush.msra.mxu0 %v245
    %269 = vmatpush.msra.mxu0 %v244
    %270 = vmatpush.msra.mxu0 %v243
    %271 = vmatpush.msra.mxu0 %v242
    %272 = vmatpush.msra.mxu0 %v241
    %273 = vmatpush.msra.mxu0 %v240
    %274 = vmatpush.msra.mxu0 %v239
    %275 = vmatmul.f32.gmra.mxu0 %v237
    %v276 = vpop.f32.mrf.mxu0
    %v277 = vadd.f32 %v257, %v276
    %278 = vmatmul.f32.gmra.mxu0 %v238
    %v279 = vpop.f32.mrf.mxu0
    %v280 = vadd.f32 %v257, %v279
    %281 = vdwg.mxu0
    %v282 = vld [vmem:[#allocation10] sm:$0xff]
    %v283 = vld [vmem:[#allocation10 + $0x8] sm:$0xff]
    %v284 = vld [vmem:[#allocation10 + $0x10] sm:$0xff]
    %v285 = vld [vmem:[#allocation10 + $0x18] sm:$0xff]
    %v286 = vld [vmem:[#allocation10 + $0x20] sm:$0xff]
    %v287 = vld [vmem:[#allocation10 + $0x28] sm:$0xff]
    %v288 = vld [vmem:[#allocation10 + $0x30] sm:$0xff]
    %v289 = vld [vmem:[#allocation10 + $0x38] sm:$0xff]
    %v290 = vld [vmem:[#allocation10 + $0x40] sm:$0xff]
    %v291 = vld [vmem:[#allocation10 + $0x48] sm:$0xff]
    %v292 = vld [vmem:[#allocation10 + $0x50] sm:$0xff]
    %v293 = vld [vmem:[#allocation10 + $0x58] sm:$0xff]
    %v294 = vld [vmem:[#allocation10 + $0x60] sm:$0xff]
    %v295 = vld [vmem:[#allocation10 + $0x68] sm:$0xff]
    %v296 = vld [vmem:[#allocation10 + $0x70] sm:$0xff]
    %v297 = vld [vmem:[#allocation10 + $0x78] sm:$0xff]
    %v298 = vld [vmem:[%s10] sm:$0x1]
    %v300 = vperm.slane %v298, 0
    %302 = vmatpush.msra.mxu0 %v297
    %303 = vmatpush.msra.mxu0 %v296
    %304 = vmatpush.msra.mxu0 %v295
    %305 = vmatpush.msra.mxu0 %v294
    %306 = vmatpush.msra.mxu0 %v293
    %307 = vmatpush.msra.mxu0 %v292
    %308 = vmatpush.msra.mxu0 %v291
    %309 = vmatpush.msra.mxu0 %v290
    %310 = vmatpush.msra.mxu0 %v289
    %311 = vmatpush.msra.mxu0 %v288
    %312 = vmatpush.msra.mxu0 %v287
    %313 = vmatpush.msra.mxu0 %v286
    %314 = vmatpush.msra.mxu0 %v285
    %315 = vmatpush.msra.mxu0 %v284
    %316 = vmatpush.msra.mxu0 %v283
    %317 = vmatpush.msra.mxu0 %v282
    %318 = vmatmul.f32.gmra.mxu0 %v277
    %v319 = vpop.f32.mrf.mxu0
    %v320 = vadd.f32 %v300, %v319
    %321 = vmatmul.f32.gmra.mxu0 %v280
    %v322 = vpop.f32.mrf.mxu0
    %v323 = vadd.f32 %v300, %v322
    %324 = vdwg.mxu0
    %v325 = vmax.f32 %v320, 0.0
    %v326 = vmax.f32 %v323, 0.0
    %v327 = vld [vmem:[#allocation11] sm:$0xff]
    %v328 = vld [vmem:[#allocation11 + $0x8] sm:$0xff]
    %v329 = vld [vmem:[#allocation11 + $0x10] sm:$0xff]
    %v330 = vld [vmem:[#allocation11 + $0x18] sm:$0xff]
    %v331 = vld [vmem:[#allocation11 + $0x20] sm:$0xff]
    %v332 = vld [vmem:[#allocation11 + $0x28] sm:$0xff]
    %v333 = vld [vmem:[#allocation11 + $0x30] sm:$0xff]
    %v334 = vld [vmem:[#allocation11 + $0x38] sm:$0xff]
    %v335 = vld [vmem:[#allocation11 + $0x40] sm:$0xff]
    %v336 = vld [vmem:[#allocation11 + $0x48] sm:$0xff]
    %v337 = vld [vmem:[#allocation11 + $0x50] sm:$0xff]
    %v338 = vld [vmem:[#allocation11 + $0x58] sm:$0xff]
    %v339 = vld [vmem:[#allocation11 + $0x60] sm:$0xff]
    %v340 = vld [vmem:[#allocation11 + $0x68] sm:$0xff]
    %v341 = vld [vmem:[#allocation11 + $0x70] sm:$0xff]
    %v342 = vld [vmem:[#allocation11 + $0x78] sm:$0xff]
    %v343 = vld [vmem:[%s11] sm:$0x1]
    %v345 = vperm.slane %v343, 0
    %347 = vmatpush.msra.mxu0 %v342
    %348 = vmatpush.msra.mxu0 %v341
    %349 = vmatpush.msra.mxu0 %v340
    %350 = vmatpush.msra.mxu0 %v339
    %351 = vmatpush.msra.mxu0 %v338
    %352 = vmatpush.msra.mxu0 %v337
    %353 = vmatpush.msra.mxu0 %v336
    %354 = vmatpush.msra.mxu0 %v335
    %355 = vmatpush.msra.mxu0 %v334
    %356 = vmatpush.msra.mxu0 %v333
    %357 = vmatpush.msra.mxu0 %v332
    %358 = vmatpush.msra.mxu0 %v331
    %359 = vmatpush.msra.mxu0 %v330
    %360 = vmatpush.msra.mxu0 %v329
    %361 = vmatpush.msra.mxu0 %v328
    %362 = vmatpush.msra.mxu0 %v327
    %363 = vmatmul.f32.gmra.mxu0 %v325
    %v364 = vpop.f32.mrf.mxu0
    %v365 = vadd.f32 %v345, %v364
    %366 = vmatmul.f32.gmra.mxu0 %v326
    %v367 = vpop.f32.mrf.mxu0
    %v368 = vadd.f32 %v345, %v367
    %369 = vdwg.mxu0
    %v370 = vmax.f32 %v365, 0.0
    %v371 = vmax.f32 %v368, 0.0
    %v372 = vld [vmem:[#allocation13] sm:$0xff]
    %v373 = vld [vmem:[#allocation13 + $0x8] sm:$0xff]
    %v374 = vld [vmem:[#allocation13 + $0x10] sm:$0xff]
    %v375 = vld [vmem:[#allocation13 + $0x18] sm:$0xff]
    %v376 = vld [vmem:[#allocation13 + $0x20] sm:$0xff]
    %v377 = vld [vmem:[#allocation13 + $0x28] sm:$0xff]
    %v378 = vld [vmem:[#allocation13 + $0x30] sm:$0xff]
    %v379 = vld [vmem:[#allocation13 + $0x38] sm:$0xff]
    %v380 = vld [vmem:[#allocation13 + $0x40] sm:$0xff]
    %v381 = vld [vmem:[#allocation13 + $0x48] sm:$0xff]
    %v382 = vld [vmem:[#allocation13 + $0x50] sm:$0xff]
    %v383 = vld [vmem:[#allocation13 + $0x58] sm:$0xff]
    %v384 = vld [vmem:[#allocation13 + $0x60] sm:$0xff]
    %v385 = vld [vmem:[#allocation13 + $0x68] sm:$0xff]
    %v386 = vld [vmem:[#allocation13 + $0x70] sm:$0xff]
    %v387 = vld [vmem:[#allocation13 + $0x78] sm:$0xff]
    %v388 = vld [vmem:[%s12] sm:$0x1]
    %v390 = vperm.slane %v388, 0
    %392 = vmatpush.msra.mxu0 %v387
    %393 = vmatpush.msra.mxu0 %v386
    %394 = vmatpush.msra.mxu0 %v385
    %395 = vmatpush.msra.mxu0 %v384
    %396 = vmatpush.msra.mxu0 %v383
    %397 = vmatpush.msra.mxu0 %v382
    %398 = vmatpush.msra.mxu0 %v381
    %399 = vmatpush.msra.mxu0 %v380
    %400 = vmatpush.msra.mxu0 %v379
    %401 = vmatpush.msra.mxu0 %v378
    %402 = vmatpush.msra.mxu0 %v377
    %403 = vmatpush.msra.mxu0 %v376
    %404 = vmatpush.msra.mxu0 %v375
    %405 = vmatpush.msra.mxu0 %v374
    %406 = vmatpush.msra.mxu0 %v373
    %407 = vmatpush.msra.mxu0 %v372
    %408 = vmatmul.f32.gmra.mxu0 %v370
    %v409 = vpop.f32.mrf.mxu0
    %v410 = vadd.f32 %v390, %v409
    %411 = vmatmul.f32.gmra.mxu0 %v371
    %v412 = vpop.f32.mrf.mxu0
    %v413 = vadd.f32 %v390, %v412
    %414 = vdwg.mxu0
    %v415 = vadd.f32 %v277, %v410
    %v416 = vadd.f32 %v280, %v413
    %417 = vst [vmem:[#allocation14] sm:$0xff] %v415
    %418 = vst [vmem:[#allocation14 + $0x8] sm:$0xff] %v416
    // Predicated region
    $region82: #{tpu_custom_call.1} parent=1 // pred_check
      _
    $region83: #{tpu_custom_call.1} parent=1 // pred_check_branch
      %420 = sbr.rel (0) target = $region85
    $region84: #{tpu_custom_call.1} parent=1 // pred_region
      %422 = vsyncadd [#allocation4], 0
      %s423 = sshll.u32 [#allocation14], 4
      %s424 = int_to_ptr.vmem [resolvable:$true] %s423
      %s425 = sshll.u32 %s13, 4
      %s426 = int_to_ptr.hbm [resolvable:$true] %s425
      %431 = dma.vmem_to_hbm [thread:$0]  %s424, 256, %s426, [#allocation4], 128, 128, 8
    $region85: #{tpu_custom_call.1} parent=1 // pred_fallthru
      _
    // Predicated region
    $region86: #{tpu_custom_call.1} parent=1 // pred_check
      _
    $region87: #{tpu_custom_call.1} parent=1 // pred_check_branch
      %433 = sbr.rel (0) target = $region89
    $region88: #{tpu_custom_call.1} parent=1 // pred_region
      %435 = dma.done [#allocation4], 256
    $region89: #{tpu_custom_call.1} parent=1 // pred_fallthru
      _
    %436 = vsyncpa [#allocation3], 1
    %437 = vsyncpa [#allocation6], 1
    %438 = vsyncpa [#allocation9], 1
    %439 = vsyncpa [#allocation12], 1
    %440 = vsyncpa [#allocation4], 1

</llo_original>
